<compile_context>
chip_gen: v6e
topology: v6e:2x2x1
jax: 0.10.0
libtpu: 0.0.40
codegen_flags: <defaults>
</compile_context>

<pallas_src>
import functools
import math

import jax
import jax.numpy as jnp
from jax.experimental import pallas as pl
from jax.experimental.pallas import tpu as pltpu


def _acl_kernel(pred_ref, tgt_ref, part_ref, *, weight, epsilon,
                batch, tile_b, height, width):
    H, W = height, width
    TB = tile_b
    R = TB * H                       # rows of the flattened working plane

    # (TB, H, W) blocks; flatten the planes along the sublane axis so the
    # rolls below stay ordinary 2-D lane/sublane XLU rotations.
    p = pred_ref[...].astype(jnp.float32).reshape(R, W)
    t = tgt_ref[...].astype(jnp.float32).reshape(R, W)

    # Binarize prediction: os[os >= 0.5] = 1 ; os[os < 0.5] = 0.
    # NOTE: the exact 3-value sqrt select below *requires* this binarization
    # (it makes d2 land exactly in {0, 1, 2}); keep the two coupled.
    os_ = jnp.where(p >= 0.5, 1.0, 0.0)

    # Shifted copies through the XLU (cyclic rolls):
    #   roll(x, n-k, axis)[i] == x[(i + k) % n].
    # Wrapped / cross-plane rows only ever hit rows >= H-2 of a plane, which
    # are zeroed by the interior row mask below.
    os_h1 = pltpu.roll(os_, shift=R - 1, axis=0)   # os[r+1, c]
    os_h2 = pltpu.roll(os_, shift=R - 2, axis=0)   # os[r+2, c]
    os_w1 = pltpu.roll(os_, shift=W - 1, axis=1)   # os[r, c+1]
    os_w2 = pltpu.roll(os_, shift=W - 2, axis=1)   # os[r, c+2]

    # delta_r = (os[1:, :] - os[:-1, :])[1:, :-2]  -> os[r+2, c] - os[r+1, c]
    # delta_c = (os[:, 1:] - os[:, :-1])[:-2, 1:]  -> os[r, c+2] - os[r, c+1]
    dr = os_h2 - os_h1
    dc = os_w2 - os_w1
    d2 = dr * dr + dc * dc                          # exactly in {0, 1, 2}

    # sqrt(d2 + eps) via a two-compare select (exact, VPU-only; EUP untouched).
    s0 = math.sqrt(epsilon)
    s1 = math.sqrt(1.0 + epsilon)
    s2 = math.sqrt(2.0 + epsilon)
    sqrt_term = jnp.where(d2 > 1.5, s2, jnp.where(d2 > 0.5, s1, s0))

    # Interior mask as a tiny (R,1) row factor x (1,W) col factor instead of
    # two full plane-sized int32 iotas (lowers vreg/VMEM pressure -> larger TB).
    rows_in_plane = jax.lax.broadcasted_iota(jnp.int32, (R, 1), 0) % H
    row_mask = (rows_in_plane < H - 2).astype(jnp.float32)           # (R, 1)
    col_mask = (jax.lax.broadcasted_iota(jnp.int32, (1, W), 1)
                < W - 2).astype(jnp.float32)                         # (1, W)

    # Per-(channel, batch-block) partial; summing the partials over the
    # batch-block axis reproduces the per-channel means of the reference
    # (divide by the exact element counts).
    interior_count = batch * max(H - 2, 0) * max(W - 2, 0)
    inv_len = weight / interior_count if interior_count > 0 else float("nan")
    inv_reg = 1.0 / float(batch * H * W)

    # region_in + region_out = os*(t-1)^2 + (1-os)*t^2 = t*t - os*(2t - 1)
    region = t * t - os_ * (2.0 * t - 1.0)

    contrib = inv_len * (sqrt_term * row_mask * col_mask) + inv_reg * region

    # Single fused reduction per grid step.
    part_ref[...] = jnp.zeros_like(part_ref) + jnp.sum(contrib)


def _pick_tile_b(B, H, W, pred_itemsize, tgt_itemsize):
    """Largest divisor of B whose per-step VMEM estimate fits ~24 MiB.

    Per extra batch plane the body keeps roughly ~8 plane-sized f32
    intermediates (os_, 4 rolls, d2/sqrt_term, region, contrib with reuse)
    plus 2 inputs x 2 pipeline buffers in the native dtype.  A 24 MiB budget
    of the 32 MiB scoped VMEM is safe on v7x (64 MiB physical) and leaves
    ample headroom on v5e/v6e (128 MiB).
    """
    plane_bytes = H * W * (8 * 4 + 2 * (pred_itemsize + tgt_itemsize))
    budget = 24 * 1024 * 1024
    tb_max = max(1, budget // plane_bytes)
    tb = 1
    for cand in range(1, B + 1):
        # Exact divisor of B -> no grid step ever reads padded planes.
        if B % cand == 0 and cand <= tb_max:
            tb = cand
    return tb


def active_contour_loss(output, target, *, weight=1.0, epsilon=1e-8,
                        ignore_index=None, reduction="mean"):
    assert output.shape == target.shape
    B, C, H, W = output.shape

    TB = _pick_tile_b(B, H, W, output.dtype.itemsize, target.dtype.itemsize)
    NB = B // TB

    kernel = functools.partial(
        _acl_kernel, weight=float(weight), epsilon=float(epsilon),
        batch=B, tile_b=TB, height=H, width=W)

    in_bytes = (output.dtype.itemsize + target.dtype.itemsize) * B * C * H * W
    cost = pl.CostEstimate(
        flops=14 * B * C * H * W,
        transcendentals=0,
        bytes_accessed=in_bytes + C * NB * 4,
    )

    # NCHW is indexed directly (no wrapper transpose / astype): the grid runs
    # over (channel, batch-block); each step sees a (TB, H, W) slab per input.
    in_spec = pl.BlockSpec((TB, pl.Squeezed(), H, W),
                           lambda c, bb: (bb, c, 0, 0))

    partials = pl.pallas_call(
        kernel,
        grid=(C, NB),
        in_specs=[in_spec, in_spec],
        out_specs=pl.BlockSpec((pl.Squeezed(), pl.Squeezed(), 1, 1),
                               lambda c, bb: (c, bb, 0, 0)),
        out_shape=jax.ShapeDtypeStruct((C, NB, 1, 1), jnp.float32),
        compiler_params=pltpu.CompilerParams(
            dimension_semantics=("parallel", "parallel"),
            vmem_limit_bytes=32 * 1024 * 1024),
        cost_estimate=cost,
    )(output, target)

    per_channel = jnp.sum(partials.reshape(C, NB), axis=1)   # (C,)

    # ignore_index is handled by dropping that channel's partial in the final
    # (tiny) XLA sum — no gather/copy of the input tensors required.
    if ignore_index is not None and 0 <= ignore_index < C:
        keep = jnp.arange(C) != ignore_index
        loss = jnp.sum(jnp.where(keep, per_channel, 0.0))
        n_count = C - 1
    else:
        loss = jnp.sum(per_channel)
        n_count = C

    if reduction == "mean":
        # n_count == 0 (ignore_index on the only channel) -> NaN, matching
        # torch's tensor division by zero instead of raising.
        loss = loss / n_count if n_count > 0 else loss * jnp.float32(jnp.nan)
    return loss


def _reference(output, target, weight=1.0, epsilon=1e-8, ignore_index=None,
               reduction="mean"):
    """Pure-JAX port of the PyTorch forward (for verification)."""
    B, C, H, W = output.shape
    total = 0.0
    n_count = 0
    for i in range(C):
        if ignore_index is not None and i == ignore_index:
            continue
        os_ = jnp.where(output[:, i] >= 0.5, 1.0, 0.0)
        ts = target[:, i]
        dr = (os_[:, 1:, :] - os_[:, :-1, :])[:, 1:, :-2] ** 2
        dc = (os_[:, :, 1:] - os_[:, :, :-1])[:, :-2, 1:] ** 2
        dp = jnp.abs(dr + dc)
        length = jnp.mean(jnp.sqrt(dp + epsilon))
        region_in = jnp.mean(os_ * (ts - 1.0) ** 2)
        region_out = jnp.mean((1.0 - os_) * ts ** 2)
        total = total + weight * length + region_in + region_out
        n_count += 1
    if reduction == "mean":
        total = total / n_count
    return total


if __name__ == "__main__":
    key = jax.random.PRNGKey(0)
    k1, k2 = jax.random.split(key)
    # Lane-dense width (multiple of 128) keeps lane rolls / stores on the
    # fast unmasked path; height is a multiple of 8 (sublane-aligned).
    B, C, H, W = 2, 4, 16, 128
    output = jax.random.uniform(k1, (B, C, H, W), dtype=jnp.float32)
    target = (jax.random.uniform(k2, (B, C, H, W)) >= 0.5).astype(jnp.float32)

    # f32 inputs.
    loss = jax.block_until_ready(
        active_contour_loss(output, target, weight=1.0, epsilon=1e-8,
                            ignore_index=None, reduction="mean"))
    ref = jax.block_until_ready(_reference(output, target))
    assert abs(float(loss) - float(ref)) < 1e-4, (float(loss), float(ref))

    # ignore_index path.
    loss_ig = jax.block_until_ready(
        active_contour_loss(output, target, ignore_index=1))
    ref_ig = jax.block_until_ready(
        _reference(output, target, ignore_index=1))
    assert abs(float(loss_ig) - float(ref_ig)) < 1e-4, (float(loss_ig),
                                                        float(ref_ig))

    # bf16 inputs (halves HBM traffic on bandwidth-bound v5e/v6e); the kernel
    # casts to f32 after the VMEM load, so the math is unchanged.
    out_bf16 = output.astype(jnp.bfloat16)
    tgt_bf16 = target.astype(jnp.bfloat16)   # exact: target is 0/1
    loss_bf16 = jax.block_until_ready(active_contour_loss(out_bf16, tgt_bf16))
    ref_bf16 = jax.block_until_ready(
        _reference(out_bf16.astype(jnp.float32), target))
    assert abs(float(loss_bf16) - float(ref_bf16)) < 1e-3, (float(loss_bf16),
                                                            float(ref_bf16))

    print("KERNEL_OK")
</pallas_src>

<mosaic_0001>
module attributes {stable_mosaic.version = 11 : i64} {
  func.func @_acl_kernel(%arg0: i32, %arg1: i32, %arg2: memref<2x1x16x128xf32, #tpu.memory_space<vmem>>, %arg3: memref<2x1x16x128xf32, #tpu.memory_space<vmem>>, %arg4: memref<1x1x1x1xf32, #tpu.memory_space<vmem>>) attributes {dimension_semantics = [#tpu.dimension_semantics<parallel>, #tpu.dimension_semantics<parallel>], iteration_bounds = array<i64: 4, 1>, scalar_prefetch = 0 : i64, scratch_operands = 0 : i64, tpu.core_type = #tpu.core_type<tc>, window_params = [{transform_indices = @transform_0, window_bounds = array<i64: 2, 1, 16, 128>}, {transform_indices = @transform_1, window_bounds = array<i64: 2, 1, 16, 128>}, {transform_indices = @transform_2, window_bounds = array<i64: 1, 1, 1, 1>}]} {
    %c0 = arith.constant 0 : index
    %c0_0 = arith.constant 0 : index
    %c0_1 = arith.constant 0 : index
    %c0_2 = arith.constant 0 : index
    %0 = vector.load %arg2[%c0, %c0_0, %c0_1, %c0_2] : memref<2x1x16x128xf32, #tpu.memory_space<vmem>>, vector<2x1x16x128xf32>
    %1 = vector.shape_cast %0 : vector<2x1x16x128xf32> to vector<2x16x128xf32>
    %2 = vector.shape_cast %1 : vector<2x16x128xf32> to vector<32x128xf32>
    %c0_3 = arith.constant 0 : index
    %c0_4 = arith.constant 0 : index
    %c0_5 = arith.constant 0 : index
    %c0_6 = arith.constant 0 : index
    %3 = vector.load %arg3[%c0_3, %c0_4, %c0_5, %c0_6] : memref<2x1x16x128xf32, #tpu.memory_space<vmem>>, vector<2x1x16x128xf32>
    %4 = vector.shape_cast %3 : vector<2x1x16x128xf32> to vector<2x16x128xf32>
    %5 = vector.shape_cast %4 : vector<2x16x128xf32> to vector<32x128xf32>
    %cst = arith.constant 5.000000e-01 : f32
    %6 = vector.broadcast %cst : f32 to vector<32x128xf32>
    %7 = arith.cmpf oge, %2, %6 : vector<32x128xf32>
    %cst_7 = arith.constant 1.000000e+00 : f32
    %cst_8 = arith.constant 0.000000e+00 : f32
    %8 = vector.broadcast %cst_7 : f32 to vector<32x128xf32>
    %9 = vector.broadcast %cst_8 : f32 to vector<32x128xf32>
    %10 = arith.select %7, %8, %9 : vector<32x128xi1>, vector<32x128xf32>
    %c31_i32 = arith.constant 31 : i32
    %11 = tpu.dynamic_rotate %10 by %c31_i32 dim 0 : vector<32x128xf32>, i32 -> vector<32x128xf32>
    %c30_i32 = arith.constant 30 : i32
    %12 = tpu.dynamic_rotate %10 by %c30_i32 dim 0 : vector<32x128xf32>, i32 -> vector<32x128xf32>
    %c127_i32 = arith.constant 127 : i32
    %13 = tpu.dynamic_rotate %10 by %c127_i32 dim 1 : vector<32x128xf32>, i32 -> vector<32x128xf32>
    %c126_i32 = arith.constant 126 : i32
    %14 = tpu.dynamic_rotate %10 by %c126_i32 dim 1 : vector<32x128xf32>, i32 -> vector<32x128xf32>
    %15 = arith.subf %12, %11 : vector<32x128xf32>
    %16 = arith.subf %14, %13 : vector<32x128xf32>
    %17 = arith.mulf %15, %15 : vector<32x128xf32>
    %18 = arith.mulf %16, %16 : vector<32x128xf32>
    %19 = arith.addf %17, %18 : vector<32x128xf32>
    %cst_9 = arith.constant 1.500000e+00 : f32
    %20 = vector.broadcast %cst_9 : f32 to vector<32x128xf32>
    %21 = arith.cmpf ogt, %19, %20 : vector<32x128xf32>
    %cst_10 = arith.constant 5.000000e-01 : f32
    %22 = vector.broadcast %cst_10 : f32 to vector<32x128xf32>
    %23 = arith.cmpf ogt, %19, %22 : vector<32x128xf32>
    %cst_11 = arith.constant 1.000000e+00 : f32
    %cst_12 = arith.constant 9.99999974E-5 : f32
    %24 = vector.broadcast %cst_11 : f32 to vector<32x128xf32>
    %25 = vector.broadcast %cst_12 : f32 to vector<32x128xf32>
    %26 = arith.select %23, %24, %25 : vector<32x128xi1>, vector<32x128xf32>
    %cst_13 = arith.constant 1.41421354 : f32
    %27 = vector.broadcast %cst_13 : f32 to vector<32x128xf32>
    %28 = arith.select %21, %27, %26 : vector<32x128xi1>, vector<32x128xf32>
    %29 = tpu.iota {dimensions = array<i32: 0>} : vector<32x1xi32>
    %c16_i32 = arith.constant 16 : i32
    %c0_i32 = arith.constant 0 : i32
    %30 = arith.cmpi eq, %c16_i32, %c0_i32 : i32
    %c1_i32 = arith.constant 1 : i32
    %31 = arith.select %30, %c1_i32, %c16_i32 : i32
    %32 = vector.broadcast %31 : i32 to vector<32x1xi32>
    %33 = arith.remsi %29, %32 : vector<32x1xi32>
    %c0_i32_14 = arith.constant 0 : i32
    %34 = vector.broadcast %c0_i32_14 : i32 to vector<32x1xi32>
    %35 = arith.cmpi ne, %33, %34 : vector<32x1xi32>
    %c0_i32_15 = arith.constant 0 : i32
    %36 = vector.broadcast %c0_i32_15 : i32 to vector<32x1xi32>
    %37 = arith.cmpi slt, %33, %36 : vector<32x1xi32>
    %c0_i32_16 = arith.constant 0 : i32
    %38 = arith.cmpi slt, %31, %c0_i32_16 : i32
    %39 = vector.broadcast %38 : i1 to vector<32x1xi1>
    %40 = vector.broadcast %39 : vector<32x1xi1> to vector<32x1xi1>
    %41 = arith.xori %37, %40 : vector<32x1xi1>
    %42 = arith.andi %41, %35 : vector<32x1xi1>
    %43 = vector.broadcast %31 : i32 to vector<32x1xi32>
    %44 = arith.addi %33, %43 : vector<32x1xi32>
    %45 = arith.select %42, %44, %33 : vector<32x1xi1>, vector<32x1xi32>
    %c14_i32 = arith.constant 14 : i32
    %46 = vector.broadcast %c14_i32 : i32 to vector<32x1xi32>
    %47 = arith.cmpi slt, %45, %46 : vector<32x1xi32>
    %48 = arith.extui %47 : vector<32x1xi1> to vector<32x1xi32>
    %49 = arith.sitofp %48 : vector<32x1xi32> to vector<32x1xf32>
    %50 = tpu.iota {dimensions = array<i32: 1>} : vector<1x128xi32>
    %c126_i32_17 = arith.constant 126 : i32
    %51 = vector.broadcast %c126_i32_17 : i32 to vector<1x128xi32>
    %52 = arith.cmpi slt, %50, %51 : vector<1x128xi32>
    %53 = arith.extui %52 : vector<1x128xi1> to vector<1x128xi32>
    %54 = arith.sitofp %53 : vector<1x128xi32> to vector<1x128xf32>
    %55 = arith.mulf %5, %5 : vector<32x128xf32>
    %cst_18 = arith.constant 2.000000e+00 : f32
    %56 = vector.broadcast %cst_18 : f32 to vector<32x128xf32>
    %57 = arith.mulf %56, %5 : vector<32x128xf32>
    %cst_19 = arith.constant 1.000000e+00 : f32
    %58 = vector.broadcast %cst_19 : f32 to vector<32x128xf32>
    %59 = arith.subf %57, %58 : vector<32x128xf32>
    %60 = arith.mulf %10, %59 : vector<32x128xf32>
    %61 = arith.subf %55, %60 : vector<32x128xf32>
    %62 = vector.broadcast %49 : vector<32x1xf32> to vector<32x128xf32>
    %63 = arith.mulf %28, %62 : vector<32x128xf32>
    %64 = vector.broadcast %54 : vector<1x128xf32> to vector<32x128xf32>
    %65 = arith.mulf %63, %64 : vector<32x128xf32>
    %cst_20 = arith.constant 2.83446716E-4 : f32
    %66 = vector.broadcast %cst_20 : f32 to vector<32x128xf32>
    %67 = arith.mulf %66, %65 : vector<32x128xf32>
    %cst_21 = arith.constant 2.44140625E-4 : f32
    %68 = vector.broadcast %cst_21 : f32 to vector<32x128xf32>
    %69 = arith.mulf %68, %61 : vector<32x128xf32>
    %70 = arith.addf %67, %69 : vector<32x128xf32>
    %cst_22 = arith.constant 0.000000e+00 : f32
    %71 = vector.broadcast %cst_22 : f32 to vector<1x1xf32>
    %72 = vector.shape_cast %70 : vector<32x128xf32> to vector<1x32x128xf32>
    %cst_23 = arith.constant dense<0.000000e+00> : vector<1xf32>
    %73 = vector.multi_reduction <add>, %72, %cst_23 [1, 2] : vector<1x32x128xf32> to vector<1xf32>
    %74 = vector.shape_cast %73 : vector<1xf32> to vector<1x1x1xf32>
    %75 = vector.extract %74[0, 0, 0] : f32 from vector<1x1x1xf32>
    %76 = vector.broadcast %75 : f32 to vector<1x1xf32>
    %77 = arith.addf %71, %76 : vector<1x1xf32>
    %c0_24 = arith.constant 0 : index
    %c0_25 = arith.constant 0 : index
    %c0_26 = arith.constant 0 : index
    %c0_27 = arith.constant 0 : index
    %78 = vector.load %arg4[%c0_24, %c0_25, %c0_26, %c0_27] : memref<1x1x1x1xf32, #tpu.memory_space<vmem>>, vector<1x1x1x1xf32>
    %79 = vector.shape_cast %78 : vector<1x1x1x1xf32> to vector<1x1xf32>
    %80 = vector.shape_cast %77 : vector<1x1xf32> to vector<1x1x1x1xf32>
    tpu.vector_store %arg4[%c0_24, %c0_25, %c0_26, %c0_27], %80 {strides = array<i32>} : memref<1x1x1x1xf32, #tpu.memory_space<vmem>>, vector<1x1x1x1xf32>,
    return
  }
  func.func @transform_0(%arg0: i32, %arg1: i32) -> (i32, i32, i32, i32) {
    %c0_i32 = arith.constant 0 : i32
    %c0_i32_0 = arith.constant 0 : i32
    %c0_i32_1 = arith.constant 0 : i32
    return %arg1, %arg0, %c0_i32, %c0_i32_0 : i32, i32, i32, i32
  }
  func.func @transform_1(%arg0: i32, %arg1: i32) -> (i32, i32, i32, i32) {
    %c0_i32 = arith.constant 0 : i32
    %c0_i32_0 = arith.constant 0 : i32
    %c0_i32_1 = arith.constant 0 : i32
    return %arg1, %arg0, %c0_i32, %c0_i32_0 : i32, i32, i32, i32
  }
  func.func @transform_2(%arg0: i32, %arg1: i32) -> (i32, i32, i32, i32) {
    %c0_i32 = arith.constant 0 : i32
    %c0_i32_0 = arith.constant 0 : i32
    %c0_i32_1 = arith.constant 0 : i32
    return %arg0, %arg1, %c0_i32, %c0_i32_0 : i32, i32, i32, i32
  }
}

</mosaic_0001>

<llo_original>
// kernel: tpu_custom_call.1
$region0: #{tpu_custom_call.1}
  #allocation0 [shape = 'u32[]', space=smem, size = 0x4, offset = 0x4, fixed_abs, tag = 'smem constant byte address 0x4 - core index']
  #allocation1 [shape = 'u32[144,128]{1,0:T(1,128)}', space=vmem, size = 0x12000, scoped, tag = 'internal scratch']
  #allocation6 [shape = 's32[]', space=sflag, size = 0x4, offset = 0, fixed_abs, tag = 'sflag constant byte address 0x0 - dummy sync flag']
  #allocation8 [shape = 's32[]', space=sflag, size = 0x4, offset = 0, fixed_abs, tag = 'sflag constant byte address 0x0 - dummy sync flag']
  %s0 = inlined_call_operand.hbm [shape: f32[2,4,16,128], index: 0, kind: input, shape index: {}]
  %s1 = inlined_call_operand.hbm [shape: f32[2,4,16,128], index: 1, kind: input, shape index: {}]
  %s2 = inlined_call_operand.vmem [shape: f32[4,1,1,1], index: 2, kind: output, shape index: {}]
  %s3 = sld [smem:[#allocation0]]
  $region49: #{tpu_custom_call.1} parent=0
    _
  %s5 = ssub.s32 1, %s3
  %s6 = scalar_select 0, %s5, %s3
  $region1: #{tpu_custom_call.1} parent=0
    #allocation2 [shape = 'u8[32768]{0}', space=vmem, size = 0x8000, scoped, tag = 'input window, operand 0']
    #allocation3 [shape = 's32[2]{0}', space=sflag, size = 0x8, scoped, tag = 'scoped memory for tpu_custom_call.1']
    #allocation4 [shape = 'u8[32768]{0}', space=vmem, size = 0x8000, scoped, tag = 'input window, operand 1']
    #allocation5 [shape = 's32[2]{0}', space=sflag, size = 0x8, scoped, tag = 'scoped memory for tpu_custom_call.1']
    %7 = vsyncpa [#allocation3], 0
    %s8 = scalar_lea.sflag [#allocation3], 1
    %9 = vsyncpa %s8, 0
    %10 = vsyncpa [#allocation5], 0
    %s11 = scalar_lea.sflag [#allocation5], 1
    %12 = vsyncpa %s11, 0
    loop: start=0, step=1, limit=6
    $region2: #{tpu_custom_call.1} parent=1 // loop_pre_header
      _
    $region3: #{tpu_custom_call.1} parent=1 // loop_header
      %s14 = sphi 0, %s18
      %p15 = scmp.ge.s32.totalorder %s14, 6
      %s21 = sphi 0, %s33
      %s22 = sphi 0, %s29
      %s23 = sphi 0, %s21
      %s24 = sphi 0, %s22
      %s25 = sphi 0, %s23
      %s26 = sphi 0, %s24
      %s38 = sphi 0, %s40
      %s41 = sphi 0, %s38
      %s42 = sphi 0, %s41
      %s58 = sphi 0, %s42
      %s66 = sphi 0, %s68
      %s69 = sphi 0, %s66
      %s70 = sphi 0, %s69
      %s86 = sphi 0, %s70
      %s94 = sphi 0, %s96
      %s97 = sphi 0, %s94
      %s98 = sphi 0, %s97
      %s114 = sphi 0, %s98
    $region4: #{tpu_custom_call.1} parent=1 // loop_header_branch
      %17 = sbr.rel (%p15) target = $region8
    $region5: #{tpu_custom_call.1} parent=1 // loop_body
      %s19 = ssub.s32 %s14, 1
      %s20 = ssub.s32 %s14, 2
      %s27 = sadd.s32 1, %s22
      %p28 = scmp.ge.s32.totalorder %s27, 1
      %s29 = scalar_select %p28, 0, %s27
      %s30 = sadd.s32 1, %s21
      %s31 = scalar_select %p28, %s30, %s21
      %p32 = scmp.ge.s32.totalorder %s31, 4
      %s33 = scalar_select %p32, 0, %s31
      %s34 = ssub.s32 %s22, %s29
      %s35 = ssub.s32 %s21, %s33
      %s36 = sor.u32 %s34, %s35
      %p37 = scmp.eq.s32.totalorder %s36, 0
      %s39 = sadd.s32 %s38, 1
      %s40 = scalar_select %p37, %s38, %s39
      %p43 = pneg %p37
      %p44 = scmp.eq.s32.totalorder %s14, 3
      %p45 = por %p43, %p44
      %p46 = scmp.ne.s32.totalorder %s38, %s41
      %p47 = scmp.eq.s32.totalorder %s14, 0
      %p48 = por %p46, %p47
      %p49 = scmp.ne.s32.totalorder %s38, %s41
      %p50 = scmp.eq.s32.totalorder %s19, 3
      %p51 = por %p49, %p50
      %p52 = scmp.ne.s32.totalorder %s41, %s42
      %p53 = scmp.eq.s32.totalorder %s19, 0
      %p54 = por %p52, %p53
      %p55 = scmp.ne.s32.totalorder %s41, %s42
      %p56 = scmp.eq.s32.totalorder %s20, 3
      %p57 = por %p55, %p56
      %p59 = scmp.ne.s32.totalorder %s42, %s58
      %p60 = scmp.eq.s32.totalorder %s20, 0
      %p61 = por %p59, %p60
      %s62 = ssub.s32 %s22, %s29
      %s63 = ssub.s32 %s21, %s33
      %s64 = sor.u32 %s62, %s63
      %p65 = scmp.eq.s32.totalorder %s64, 0
      %s67 = sadd.s32 %s66, 1
      %s68 = scalar_select %p65, %s66, %s67
      %p71 = pneg %p65
      %p72 = scmp.eq.s32.totalorder %s14, 3
      %p73 = por %p71, %p72
      %p74 = scmp.ne.s32.totalorder %s66, %s69
      %p75 = scmp.eq.s32.totalorder %s14, 0
      %p76 = por %p74, %p75
      %p77 = scmp.ne.s32.totalorder %s66, %s69
      %p78 = scmp.eq.s32.totalorder %s19, 3
      %p79 = por %p77, %p78
      %p80 = scmp.ne.s32.totalorder %s69, %s70
      %p81 = scmp.eq.s32.totalorder %s19, 0
      %p82 = por %p80, %p81
      %p83 = scmp.ne.s32.totalorder %s69, %s70
      %p84 = scmp.eq.s32.totalorder %s20, 3
      %p85 = por %p83, %p84
      %p87 = scmp.ne.s32.totalorder %s70, %s86
      %p88 = scmp.eq.s32.totalorder %s20, 0
      %p89 = por %p87, %p88
      %s90 = ssub.s32 %s21, %s33
      %s91 = ssub.s32 %s22, %s29
      %s92 = sor.u32 %s90, %s91
      %p93 = scmp.eq.s32.totalorder %s92, 0
      %s95 = sadd.s32 %s94, 1
      %s96 = scalar_select %p93, %s94, %s95
      %p99 = pneg %p93
      %p100 = scmp.eq.s32.totalorder %s14, 3
      %p101 = por %p99, %p100
      %p102 = scmp.ne.s32.totalorder %s94, %s97
      %p103 = scmp.eq.s32.totalorder %s14, 0
      %p104 = por %p102, %p103
      %p105 = scmp.ne.s32.totalorder %s94, %s97
      %p106 = scmp.eq.s32.totalorder %s19, 3
      %p107 = por %p105, %p106
      %p108 = scmp.ne.s32.totalorder %s97, %s98
      %p109 = scmp.eq.s32.totalorder %s19, 0
      %p110 = por %p108, %p109
      %p111 = scmp.ne.s32.totalorder %s97, %s98
      %p112 = scmp.eq.s32.totalorder %s20, 3
      %p113 = por %p111, %p112
      %p115 = scmp.ne.s32.totalorder %s98, %s114
      %p116 = scmp.eq.s32.totalorder %s20, 0
      %p117 = por %p115, %p116
      %p118 = scmp.le.s32.totalorder 1, %s14
      %p119 = scmp.lt.s32.totalorder %s14, 5
      %p120 = pnand %p118, %p119
      %p121 = pneg %p120
      // Predicated region
      $region9: #{tpu_custom_call.1} parent=5 // pred_check
        _
      $region10: #{tpu_custom_call.1} parent=5 // pred_check_branch
        %123 = sbr.rel (%p120) target = $region12
      $region11: #{tpu_custom_call.1} parent=5 // pred_region
        %s124 = ssub.s32 %s14, 1
      $region12: #{tpu_custom_call.1} parent=5 // pred_fallthru
        _
      %p125 = scmp.lt.s32.totalorder %s14, 4
      // Predicated region
      $region13: #{tpu_custom_call.1} parent=5 // pred_check
        %p126 = pneg %p125
      $region14: #{tpu_custom_call.1} parent=5 // pred_check_branch
        %128 = sbr.rel (%p126) target = $region16
      $region15: #{tpu_custom_call.1} parent=5 // pred_region
        // Predicated region
        $region17: #{tpu_custom_call.1} parent=15 // pred_check
          %p129 = pneg %p48
        $region18: #{tpu_custom_call.1} parent=15 // pred_check_branch
          %131 = sbr.rel (%p129) target = $region20
        $region19: #{tpu_custom_call.1} parent=15 // pred_region
          #allocation7 [shape = 'u32[6]{0}', space=smem, size = 0x18, scoped, tag = 'DMA stride descriptor']
          %s132 = sand.u32 %s38, 1
          %s133 = scalar_lea.sflag [#allocation3], %s132
          %s134 = sand.u32 %s38, 1
          %s135 = smul.addr %s134, 32
          %s136 = scalar_lea.vmem [#allocation2], %s135
          %s137 = smul.u32 2, %s22
          %s139 = ssub.s32 512, 512
          %140 = vsyncadd %s133, %s139
          %s141 = smul.addr %s21, 2
          %s142 = smul.addr %s137, 8
          %s143 = sadd.s32 %s141, %s142
          %s144 = smul.addr %s143, 128
          %s145 = scalar_lea.hbm %s0, %s144
          %s147 = sshll.u32 1, 14
          %s148 = sxor.u32 4294967295, %s147
          %s150 = sld [smem:[#allocation0]]
          %s151 = sadd.s32 2, %s150
          %s153 = sshll.u32 7, 26
          %s154 = sxor.u32 4294967295, %s153
          %s155 = sand.u32 0, %s154
          %s156 = sshll.u32 %s151, 26
          %s157 = sor.u32 %s155, %s156
          %s158 = sshll.u32 %s136, 4
          %s159 = int_to_ptr.vmem [resolvable:$true] %s158
          %165 = sst [smem:[#allocation7]] 1024
          %s166 = scalar_lea.smem [#allocation7], 1
          %167 = sst [smem:[%s166]] 256
          %s168 = scalar_lea.smem [#allocation7], 2
          %169 = sst [smem:[%s168]] 2
          %s170 = scalar_lea.smem [#allocation7], 3
          %171 = sst [smem:[%s170]] 128
          %s172 = scalar_lea.smem [#allocation7], 4
          %173 = sst [smem:[%s172]] 128
          %s174 = scalar_lea.smem [#allocation7], 5
          %175 = sst [smem:[%s174]] 8
          %177 = dma.general %s145, 512, %s159, %s133, 131072, [#allocation7], %s157, 0
        $region20: #{tpu_custom_call.1} parent=15 // pred_fallthru
          _
        // Predicated region
        $region21: #{tpu_custom_call.1} parent=15 // pred_check
          %p178 = pneg %p76
        $region22: #{tpu_custom_call.1} parent=15 // pred_check_branch
          %180 = sbr.rel (%p178) target = $region24
        $region23: #{tpu_custom_call.1} parent=15 // pred_region
          #allocation9 [shape = 'u32[6]{0}', space=smem, size = 0x18, scoped, tag = 'DMA stride descriptor']
          %s181 = sand.u32 %s66, 1
          %s182 = scalar_lea.sflag [#allocation5], %s181
          %s183 = sand.u32 %s66, 1
          %s184 = smul.addr %s183, 32
          %s185 = scalar_lea.vmem [#allocation4], %s184
          %s186 = smul.u32 2, %s22
          %s188 = ssub.s32 512, 512
          %189 = vsyncadd %s182, %s188
          %s190 = smul.addr %s21, 2
          %s191 = smul.addr %s186, 8
          %s192 = sadd.s32 %s190, %s191
          %s193 = smul.addr %s192, 128
          %s194 = scalar_lea.hbm %s1, %s193
          %s196 = sshll.u32 1, 14
          %s197 = sxor.u32 4294967295, %s196
          %s199 = sld [smem:[#allocation0]]
          %s200 = sadd.s32 2, %s199
          %s202 = sshll.u32 7, 26
          %s203 = sxor.u32 4294967295, %s202
          %s204 = sand.u32 0, %s203
          %s205 = sshll.u32 %s200, 26
          %s206 = sor.u32 %s204, %s205
          %s207 = sshll.u32 %s185, 4
          %s208 = int_to_ptr.vmem [resolvable:$true] %s207
          %214 = sst [smem:[#allocation9]] 1024
          %s215 = scalar_lea.smem [#allocation9], 1
          %216 = sst [smem:[%s215]] 256
          %s217 = scalar_lea.smem [#allocation9], 2
          %218 = sst [smem:[%s217]] 2
          %s219 = scalar_lea.smem [#allocation9], 3
          %220 = sst [smem:[%s219]] 128
          %s221 = scalar_lea.smem [#allocation9], 4
          %222 = sst [smem:[%s221]] 128
          %s223 = scalar_lea.smem [#allocation9], 5
          %224 = sst [smem:[%s223]] 8
          %226 = dma.general %s194, 512, %s208, %s182, 131072, [#allocation9], %s206, 0
        $region24: #{tpu_custom_call.1} parent=15 // pred_fallthru
          _
      $region16: #{tpu_custom_call.1} parent=5 // pred_fallthru
        _
      %p227 = scmp.le.s32.totalorder 1, %s14
      %p228 = scmp.lt.s32.totalorder %s14, 5
      %p229 = pnand %p227, %p228
      %p230 = pneg %p229
      // Predicated region
      $region25: #{tpu_custom_call.1} parent=5 // pred_check
        _
      $region26: #{tpu_custom_call.1} parent=5 // pred_check_branch
        %232 = sbr.rel (%p229) target = $region28
      $region27: #{tpu_custom_call.1} parent=5 // pred_region
        %s233 = ssub.s32 %s14, 1
        %s234 = sand.u32 %s41, 1
        %s235 = scalar_lea.sflag [#allocation3], %s234
        %s236 = sand.u32 %s41, 1
        %s237 = smul.addr %s236, 32
        %s238 = scalar_lea.vmem [#allocation2], %s237
        // Predicated region
        $region29: #{tpu_custom_call.1} parent=27 // pred_check
          %p239 = pneg %p54
        $region30: #{tpu_custom_call.1} parent=27 // pred_check_branch
          %241 = sbr.rel (%p239) target = $region32
        $region31: #{tpu_custom_call.1} parent=27 // pred_region
          %242 = dma.done %s235, 512
        $region32: #{tpu_custom_call.1} parent=27 // pred_fallthru
          _
        %s243 = sand.u32 %s69, 1
        %s244 = scalar_lea.sflag [#allocation5], %s243
        %s245 = sand.u32 %s69, 1
        %s246 = smul.addr %s245, 32
        %s247 = scalar_lea.vmem [#allocation4], %s246
        // Predicated region
        $region33: #{tpu_custom_call.1} parent=27 // pred_check
          %p248 = pneg %p82
        $region34: #{tpu_custom_call.1} parent=27 // pred_check_branch
          %250 = sbr.rel (%p248) target = $region36
        $region35: #{tpu_custom_call.1} parent=27 // pred_region
          %251 = dma.done %s244, 512
        $region36: #{tpu_custom_call.1} parent=27 // pred_fallthru
          _
        %s252 = sand.u32 %s41, 1
        %s253 = scalar_lea.sflag [#allocation3], %s252
        %s254 = sand.u32 %s41, 1
        %s255 = smul.addr %s254, 32
        %s256 = scalar_lea.vmem [#allocation2], %s255
        %p257 = pneg %p54
        %p258 = pneg %p51
        %s259 = sand.u32 %s69, 1
        %s260 = scalar_lea.sflag [#allocation5], %s259
        %s261 = sand.u32 %s69, 1
        %s262 = smul.addr %s261, 32
        %s263 = scalar_lea.vmem [#allocation4], %s262
        %p264 = pneg %p82
        %p265 = pneg %p79
        %p266 = pneg %p110
        %p267 = pneg %p107
        %p268 = scmp.lt.s32.totalorder %s23, 3
        %s269 = scalar_select %p268, %s23, 3
        %p270 = scmp.lt.s32.totalorder %s24, 0
        %s271 = scalar_select %p270, %s24, 0
        %s272 = sadd.s32 %s271, %s269
        %s273 = scalar_lea.vmem %s2, %s272
        %s274 = smul.u32 2, %s24
        %s275 = smul.u32 2, %s24
        %p276 = scmp.lt.s32.totalorder %s23, 3
        %s277 = scalar_select %p276, %s23, 3
        %p278 = scmp.lt.s32.totalorder %s24, 0
        %s279 = scalar_select %p278, %s24, 0
        %s280 = sadd.s32 %s279, %s277
        %s281 = scalar_lea.vmem %s2, %s280
        %v282 = vld [vmem:[%s238] sm:$0xff]
        %v283 = vld [vmem:[%s238 + $0x8] sm:$0xff]
        %v284 = vld [vmem:[%s238 + $0x10] sm:$0xff]
        %v285 = vld [vmem:[%s238 + $0x18] sm:$0xff]
        %v286 = vld [vmem:[%s247] sm:$0xff]
        %v287 = vld [vmem:[%s247 + $0x8] sm:$0xff]
        %v288 = vld [vmem:[%s247 + $0x10] sm:$0xff]
        %v289 = vld [vmem:[%s247 + $0x18] sm:$0xff]
        %vm290 = vcmp.ge.f32.partialorder %v282, 0.5
        %vm291 = vcmp.ge.f32.partialorder %v283, 0.5
        %vm292 = vcmp.ge.f32.partialorder %v284, 0.5
        %vm293 = vcmp.ge.f32.partialorder %v285, 0.5
        %v294 = vsel %vm290, 1.0, 0.0
        %v295 = vsel %vm291, 1.0, 0.0
        %v296 = vsel %vm292, 1.0, 0.0
        %v297 = vsel %vm293, 1.0, 0.0
        %v298 = vrot.slane %v294, 1
        %v299 = vrot.slane %v295, 1
        %v300 = vrot.slane %v296, 1
        %v301 = vrot.slane %v297, 1
        %v302 = vlaneseq
        %v303 = vshrl.u32 %v302, 7
        %vm304 = vcmp.lt.s32.totalorder %v303, 7
        %v305 = vsel %vm304, %v300, %v301
        %v306 = vsel %vm304, %v299, %v300
        %v307 = vsel %vm304, %v298, %v299
        %v308 = vsel %vm304, %v301, %v298
        %v309 = vrot.slane %v294, 2
        %v310 = vrot.slane %v295, 2
        %v311 = vrot.slane %v296, 2
        %v312 = vrot.slane %v297, 2
        %vm313 = vcmp.lt.s32.totalorder %v303, 6
        %v314 = vsel %vm313, %v311, %v312
        %v315 = vsel %vm313, %v310, %v311
        %v316 = vsel %vm313, %v309, %v310
        %v317 = vsel %vm313, %v312, %v309
        %318 = vrot.lane.b32.xlu0 %v294, 127
        %v319 = vpop.permute.xlu0 %318
        %320 = vrot.lane.b32.xlu0 %v295, 127
        %v321 = vpop.permute.xlu0 %320
        %322 = vrot.lane.b32.xlu0 %v296, 127
        %v323 = vpop.permute.xlu0 %322
        %324 = vrot.lane.b32.xlu0 %v297, 127
        %v325 = vpop.permute.xlu0 %324
        %326 = vrot.lane.b32.xlu0 %v294, 126
        %v327 = vpop.permute.xlu0 %326
        %328 = vrot.lane.b32.xlu0 %v295, 126
        %v329 = vpop.permute.xlu0 %328
        %330 = vrot.lane.b32.xlu0 %v296, 126
        %v331 = vpop.permute.xlu0 %330
        %332 = vrot.lane.b32.xlu0 %v297, 126
        %v333 = vpop.permute.xlu0 %332
        %v334 = vsub.f32 %v316, %v307
        %v335 = vsub.f32 %v315, %v306
        %v336 = vsub.f32 %v314, %v305
        %v337 = vsub.f32 %v317, %v308
        %v338 = vsub.f32 %v327, %v319
        %v339 = vsub.f32 %v329, %v321
        %v340 = vsub.f32 %v331, %v323
        %v341 = vsub.f32 %v333, %v325
        %v342 = vmul.f32 %v334, %v334
        %v343 = vmul.f32 %v335, %v335
        %v344 = vmul.f32 %v336, %v336
        %v345 = vmul.f32 %v337, %v337
        %v346 = vmul.f32 %v338, %v338
        %v347 = vmul.f32 %v339, %v339
        %v348 = vmul.f32 %v340, %v340
        %v349 = vmul.f32 %v341, %v341
        %v350 = vadd.f32 %v342, %v346
        %v351 = vadd.f32 %v343, %v347
        %v352 = vadd.f32 %v344, %v348
        %v353 = vadd.f32 %v345, %v349
        %vm354 = vcmp.gt.f32.partialorder %v350, 1.5
        %vm355 = vcmp.gt.f32.partialorder %v351, 1.5
        %vm356 = vcmp.gt.f32.partialorder %v352, 1.5
        %vm357 = vcmp.gt.f32.partialorder %v353, 1.5
        %vm358 = vcmp.gt.f32.partialorder %v350, 0.5
        %vm359 = vcmp.gt.f32.partialorder %v351, 0.5
        %vm360 = vcmp.gt.f32.partialorder %v352, 0.5
        %vm361 = vcmp.gt.f32.partialorder %v353, 0.5
        %v362 = vsel %vm358, 1.0, 0.0001
        %v363 = vsel %vm359, 1.0, 0.0001
        %v364 = vsel %vm360, 1.0, 0.0001
        %v365 = vsel %vm361, 1.0, 0.0001
        %v366 = vsel %vm354, 1.4142135, %v362
        %v367 = vsel %vm355, 1.4142135, %v363
        %v368 = vsel %vm356, 1.4142135, %v364
        %v369 = vsel %vm357, 1.4142135, %v365
        %v370 = vadd.s32 %v303, 8
        %v371 = vadd.s32 %v303, 16
        %v372 = vadd.s32 %v303, 24
        %vm373 = vcmp.lt.s32.totalorder %v303, 0
        %v374 = vsub.s32 0, %v303
        %v375 = vsel %vm373, %v374, %v303
        %v376 = vshrl.u32 %v375, 4
        %v377 = vand.u32 %v375, 15
        %v378 = vsub.s32 0, %v377
        %v379 = vsel %vm373, %v378, %v377
        %vm380 = vcmp.lt.s32.totalorder %v370, 0
        %v381 = vsub.s32 0, %v370
        %v382 = vsel %vm380, %v381, %v370
        %v383 = vshrl.u32 %v382, 4
        %v384 = vand.u32 %v382, 15
        %v385 = vsub.s32 0, %v384
        %v386 = vsel %vm380, %v385, %v384
        %vm387 = vcmp.lt.s32.totalorder %v371, 0
        %v388 = vsub.s32 0, %v371
        %v389 = vsel %vm387, %v388, %v371
        %v390 = vshrl.u32 %v389, 4
        %v391 = vand.u32 %v389, 15
        %v392 = vsub.s32 0, %v391
        %v393 = vsel %vm387, %v392, %v391
        %vm394 = vcmp.lt.s32.totalorder %v372, 0
        %v395 = vsub.s32 0, %v372
        %v396 = vsel %vm394, %v395, %v372
        %v397 = vshrl.u32 %v396, 4
        %v398 = vand.u32 %v396, 15
        %v399 = vsub.s32 0, %v398
        %v400 = vsel %vm394, %v399, %v398
        %vm401 = vcmp.ne.s32.totalorder %v379, 0
        %vm402 = vcmp.ne.s32.totalorder %v386, 0
        %vm403 = vcmp.ne.s32.totalorder %v393, 0
        %vm404 = vcmp.ne.s32.totalorder %v400, 0
        %vm405 = vcmp.lt.s32.totalorder %v379, 0
        %vm406 = vcmp.lt.s32.totalorder %v386, 0
        %vm407 = vcmp.lt.s32.totalorder %v393, 0
        %vm408 = vcmp.lt.s32.totalorder %v400, 0
        %vm409 = vmand %vm405, %vm401
        %vm410 = vmand %vm406, %vm402
        %vm411 = vmand %vm407, %vm403
        %vm412 = vmand %vm408, %vm404
        %v413 = vadd.s32 %v379, 16
        %v414 = vadd.s32 %v386, 16
        %v415 = vadd.s32 %v393, 16
        %v416 = vadd.s32 %v400, 16
        %v417 = vsel %vm409, %v413, %v379
        %v418 = vsel %vm410, %v414, %v386
        %v419 = vsel %vm411, %v415, %v393
        %v420 = vsel %vm412, %v416, %v400
        %vm421 = vcmp.lt.s32.totalorder %v417, 14
        %vm422 = vcmp.lt.s32.totalorder %v418, 14
        %vm423 = vcmp.lt.s32.totalorder %v419, 14
        %vm424 = vcmp.lt.s32.totalorder %v420, 14
        %v425 = vsel %vm421, 1, 0
        %v426 = vsel %vm422, 1, 0
        %v427 = vsel %vm423, 1, 0
        %v428 = vsel %vm424, 1, 0
        %v429 = vcvt.s32.f32 %v425
        %v430 = vcvt.s32.f32 %v426
        %v431 = vcvt.s32.f32 %v427
        %v432 = vcvt.s32.f32 %v428
        %v433 = vlaneseq
        %v434 = vand.u32 %v433, 127
        %vm435 = vcmp.lt.s32.totalorder %v434, 126
        %v436 = vsel %vm435, 1, 0
        %v437 = vcvt.s32.f32 %v436
        %v438 = vmul.f32 %v286, %v286
        %v439 = vmul.f32 %v287, %v287
        %v440 = vmul.f32 %v288, %v288
        %v441 = vmul.f32 %v289, %v289
        %v442 = vmul.f32 %v286, 2.0
        %v443 = vmul.f32 %v287, 2.0
        %v444 = vmul.f32 %v288, 2.0
        %v445 = vmul.f32 %v289, 2.0
        %v446 = vsub.f32 %v442, 1.0
        %v447 = vsub.f32 %v443, 1.0
        %v448 = vsub.f32 %v444, 1.0
        %v449 = vsub.f32 %v445, 1.0
        %v450 = vmul.f32 %v294, %v446
        %v451 = vmul.f32 %v295, %v447
        %v452 = vmul.f32 %v296, %v448
        %v453 = vmul.f32 %v297, %v449
        %v454 = vsub.f32 %v438, %v450
        %v455 = vsub.f32 %v439, %v451
        %v456 = vsub.f32 %v440, %v452
        %v457 = vsub.f32 %v441, %v453
        %v458 = vmul.f32 %v366, %v429
        %v459 = vmul.f32 %v367, %v430
        %v460 = vmul.f32 %v368, %v431
        %v461 = vmul.f32 %v369, %v432
        %v462 = vmul.f32 %v458, %v437
        %v463 = vmul.f32 %v459, %v437
        %v464 = vmul.f32 %v460, %v437
        %v465 = vmul.f32 %v461, %v437
        %v466 = vmul.f32 %v462, 0.00028344672
        %v467 = vmul.f32 %v463, 0.00028344672
        %v468 = vmul.f32 %v464, 0.00028344672
        %v469 = vmul.f32 %v465, 0.00028344672
        %v470 = vmul.f32 %v454, 0.00024414063
        %v471 = vmul.f32 %v455, 0.00024414063
        %v472 = vmul.f32 %v456, 0.00024414063
        %v473 = vmul.f32 %v457, 0.00024414063
        %v474 = vadd.f32 %v466, %v470
        %v475 = vadd.f32 %v467, %v471
        %v476 = vadd.f32 %v468, %v472
        %v477 = vadd.f32 %v469, %v473
        %v478 = vadd.f32 %v474, %v475
        %v479 = vadd.f32 %v478, %v476
        %v480 = vadd.f32 %v479, %v477
        %481 = vadd.xlane.f32.xlu0 %v480
        %v482 = vpop.xlane.xlu0 %481
        %v483 = vrot.slane %v482, 4
        %v484 = vadd.f32 %v482, %v483
        %v485 = vrot.slane %v484, 2
        %v486 = vadd.f32 %v484, %v485
        %v487 = vrot.slane %v486, 1
        %v488 = vadd.f32 %v486, %v487
        %s489 = vtos %v488
        %v490 = vstv %s489
        %v491 = vadd.f32 %v490, 0.0
        %vm492 = vcmask 0
        %493 = vst.msk [vmem:[%s281] sm:$0x1] %vm492, %v491
        %p494 = scmp.lt.s32.totalorder %s23, 3
        %s495 = scalar_select %p494, %s23, 3
        %p496 = scmp.lt.s32.totalorder %s24, 0
        %s497 = scalar_select %p496, %s24, 0
        %s498 = sadd.s32 %s497, %s495
        %s499 = scalar_lea.vmem %s2, %s498
        // Predicated region
        $region37: #{tpu_custom_call.1} parent=27 // pred_check
          %p500 = pneg %p107
        $region38: #{tpu_custom_call.1} parent=27 // pred_check_branch
          %502 = sbr.rel (%p500) target = $region40
        $region39: #{tpu_custom_call.1} parent=27 // pred_region
          _
        $region40: #{tpu_custom_call.1} parent=27 // pred_fallthru
          _
      $region28: #{tpu_custom_call.1} parent=5 // pred_fallthru
        _
      %p503 = scmp.le.s32.totalorder 2, %s14
      // Predicated region
      $region41: #{tpu_custom_call.1} parent=5 // pred_check
        %p504 = pneg %p503
      $region42: #{tpu_custom_call.1} parent=5 // pred_check_branch
        %506 = sbr.rel (%p504) target = $region44
      $region43: #{tpu_custom_call.1} parent=5 // pred_region
        %s507 = ssub.s32 %s14, 2
        // Predicated region
        $region45: #{tpu_custom_call.1} parent=43 // pred_check
          %p508 = pneg %p113
        $region46: #{tpu_custom_call.1} parent=43 // pred_check_branch
          %510 = sbr.rel (%p508) target = $region48
        $region47: #{tpu_custom_call.1} parent=43 // pred_region
          %p511 = scmp.lt.s32.totalorder %s25, 3
          %s512 = scalar_select %p511, %s25, 3
          %p513 = scmp.lt.s32.totalorder %s26, 0
          %s514 = scalar_select %p513, %s26, 0
          %s515 = sadd.s32 %s514, %s512
          %s516 = scalar_lea.vmem %s2, %s515
        $region48: #{tpu_custom_call.1} parent=43 // pred_fallthru
          _
      $region44: #{tpu_custom_call.1} parent=5 // pred_fallthru
        _
    $region6: #{tpu_custom_call.1} parent=1 // loop_footer
      %s18 = sadd.s32 1, %s14
    $region7: #{tpu_custom_call.1} parent=1 // loop_footer_branch
      %13 = sbr.rel target = $region3
    $region8: #{tpu_custom_call.1} parent=1 // loop_exit
      _
    %517 = vsyncpa [#allocation3], 1
    %s518 = scalar_lea.sflag [#allocation3], 1
    %519 = vsyncpa %s518, 1
    %520 = vsyncpa [#allocation5], 1
    %s521 = scalar_lea.sflag [#allocation5], 1
    %522 = vsyncpa %s521, 1

</llo_original>
